<compile_context>
chip_gen: v7x
topology: tpu7x:2x2x1
jax: 0.10.0
libtpu: 0.0.40
codegen_flags: <defaults>
</compile_context>

<pallas_src>
import jax
import jax.numpy as jnp
from jax.experimental import pallas as pl
from jax.experimental.pallas import tpu as pltpu

IN_DIM = 32        # hyperparameter.embed_dim
HIDDEN = 32        # hyperparameter.hidden_dim
N_LABEL = 5        # hyperparameter.n_label
NLP = 128          # N_LABEL padded to a full lane width (lane-dense log-prob store)
MAX_CHILDREN = 4   # static bound on children per node
NUM_WORDS = 8
G4 = 4 * HIDDEN    # concatenated gate width  [i | o | u | f]


def _nodes_pad(num_nodes):
    # state-slab rows: one slot per node + 1 reserved all-zero slot, rounded up to sublane(8)
    return max(8, ((num_nodes + 1 + 7) // 8) * 8)


# ----------------------------------------------------------------------------
# Fused per-tree kernel: single grid step, in-kernel loop over nodes
# ----------------------------------------------------------------------------
def tree_lstm_kernel(widx_ref, cidx_ref,                       # scalar prefetch (SMEM)
                     embeds_ref, wx_ref, wh_ref, b_ref,        # resident VMEM inputs
                     wo_ref, bo_ref, lblv_ref,
                     logp_ref, loss_ref, state_ref):           # VMEM outputs
    H = HIDDEN
    num_nodes = widx_ref.shape[0]

    # Zero the packed [c | h] state slab (includes the reserved zero slot used by padding
    # children). Post-order schedule guarantees every real child row is written before read.
    state_ref[...] = jnp.zeros_like(state_ref)

    # Weights / bias loaded once, live across the whole node loop.
    wx = wx_ref[...]          # (IN_DIM, 4H)
    wh = wh_ref[...]          # (HIDDEN, 4H)
    b = b_ref[...]            # (1, 4H)  combined bx + bh

    def node_step(n, carry):
        base = n * MAX_CHILDREN
        # Gather child states (packed rows) from the resident slab; padding -> zero slot.
        rows = [state_ref[pl.ds(cidx_ref[base + k], 1), :] for k in range(MAX_CHILDREN)]
        child = jnp.concatenate(rows, axis=0)                  # (MC, 2H) = [c | h]
        child_c = child[:, :H]
        child_h = child[:, H:]

        # In-VMEM embedding row gather.
        x = embeds_ref[pl.ds(widx_ref[n], 1), :]               # (1, IN_DIM)

        # Two lane-dense MXU dots per node.
        gx = jnp.dot(x, wx, preferred_element_type=jnp.float32) + b        # (1, 4H)
        gch = jnp.dot(child_h, wh, preferred_element_type=jnp.float32)     # (MC, 4H)

        # child_h_sum @ Wh == row-sum of (child_h @ Wh); padding rows are zero.
        g = gx + jnp.sum(gch, axis=0, keepdims=True)                       # (1, 4H)

        i = jax.nn.sigmoid(g[:, 0 * H:1 * H])
        o = jax.nn.sigmoid(g[:, 1 * H:2 * H])
        u = jnp.tanh(g[:, 2 * H:3 * H])
        # per-child forget gates: f_k = sigmoid(fh(child_h_k) + fx(x))  (biases in gx)
        f = jax.nn.sigmoid(gch[:, 3 * H:4 * H] + gx[:, 3 * H:4 * H])       # (MC, H)

        c = i * u + jnp.sum(f * child_c, axis=0, keepdims=True)
        h = o * jnp.tanh(c)

        state_ref[pl.ds(n, 1), :H] = c
        state_ref[pl.ds(n, 1), H:] = h
        return carry

    jax.lax.fori_loop(0, num_nodes, node_step, 0)

    # --- Deferred output head: one batched matmul + masked log-softmax over the slab ---
    h_all = state_ref[:, H:]                                   # (nodes_pad, H)
    logits = jnp.dot(h_all, wo_ref[...], preferred_element_type=jnp.float32) + bo_ref[...]
    lane = jax.lax.broadcasted_iota(jnp.int32, logits.shape, 1)
    valid = lane < N_LABEL
    logits = jnp.where(valid, logits, jnp.full_like(logits, -1e30))
    m = jnp.max(logits, axis=1, keepdims=True)
    p = jnp.where(valid, jnp.exp(logits - m), jnp.zeros_like(logits))
    lse = jnp.log(jnp.sum(p, axis=1, keepdims=True)) + m
    logp = logits - lse
    logp_ref[...] = logp                                       # one lane-dense store

    # NLLLoss (batch of 1 per node), accumulated in a single vectorized reduction.
    # labels_v rows for unlabeled / padding / zero-slot rows are -1 -> never match a lane.
    lbl = lblv_ref[...]                                        # (nodes_pad, 1) int32
    picked = jnp.where(lane == lbl, logp, jnp.zeros_like(logp))
    per_node = jnp.sum(picked, axis=1, keepdims=True)          # (nodes_pad, 1)
    loss_ref[...] = -jnp.sum(per_node, axis=0, keepdims=True)  # (1, 1)


def tree_lstm_forward(widx, cidx, labels, embeds, params):
    num_nodes = widx.shape[0]
    nodes_pad = _nodes_pad(num_nodes)
    nw, in_dim = embeds.shape

    bias = params["bx"] + params["bh"]                                     # combined bias
    labels_v = jnp.full((nodes_pad, 1), -1, jnp.int32).at[:num_nodes, 0].set(labels)

    grid_spec = pltpu.PrefetchScalarGridSpec(
        num_scalar_prefetch=2,          # widx, cidx (flattened) -> SMEM
        grid=(1,),                      # single dispatch; node loop lives inside the kernel
        in_specs=[
            pl.BlockSpec((nw, in_dim), lambda i, *_: (0, 0)),       # embeds (resident)
            pl.BlockSpec((IN_DIM, G4), lambda i, *_: (0, 0)),       # Wx
            pl.BlockSpec((HIDDEN, G4), lambda i, *_: (0, 0)),       # Wh
            pl.BlockSpec((1, G4), lambda i, *_: (0, 0)),            # bias (bx + bh)
            pl.BlockSpec((HIDDEN, NLP), lambda i, *_: (0, 0)),      # Wout (lane-padded)
            pl.BlockSpec((1, NLP), lambda i, *_: (0, 0)),           # bout (lane-padded)
            pl.BlockSpec((nodes_pad, 1), lambda i, *_: (0, 0)),     # labels (per slab row)
        ],
        out_specs=(
            pl.BlockSpec((nodes_pad, NLP), lambda i, *_: (0, 0)),       # log-probs slab
            pl.BlockSpec((1, 1), lambda i, *_: (0, 0)),                 # loss
            pl.BlockSpec((nodes_pad, 2 * HIDDEN), lambda i, *_: (0, 0)),  # packed [c | h]
        ),
    )
    return pl.pallas_call(
        tree_lstm_kernel,
        grid_spec=grid_spec,
        out_shape=(
            jax.ShapeDtypeStruct((nodes_pad, NLP), jnp.float32),
            jax.ShapeDtypeStruct((1, 1), jnp.float32),
            jax.ShapeDtypeStruct((nodes_pad, 2 * HIDDEN), jnp.float32),
        ),
        compiler_params=pltpu.CompilerParams(dimension_semantics=("arbitrary",)),
    )(widx, cidx, embeds, params["Wx"], params["Wh"], bias,
      params["Wout"], params["bout"], labels_v)


# ----------------------------------------------------------------------------
# Parameters (PyTorch-Linear-style init), gate-concatenated layout [i|o|u|f]
# ----------------------------------------------------------------------------
def init_params(key):
    def linear(key, fan_in, fan_out):
        k1, k2 = jax.random.split(key)
        bound = 1.0 / jnp.sqrt(fan_in)
        w = jax.random.uniform(k1, (fan_in, fan_out), jnp.float32, -bound, bound)
        b = jax.random.uniform(k2, (1, fan_out), jnp.float32, -bound, bound)
        return w, b

    keys = jax.random.split(key, 9)
    wx_l, bx_l, wh_l, bh_l = [], [], [], []
    for g in range(4):                                  # gate order [i, o, u, f]
        wx, bx = linear(keys[2 * g], IN_DIM, HIDDEN)
        wh, bh = linear(keys[2 * g + 1], HIDDEN, HIDDEN)
        wx_l.append(wx); bx_l.append(bx); wh_l.append(wh); bh_l.append(bh)
    wout, bout = linear(keys[8], HIDDEN, N_LABEL)
    wout_pad = jnp.zeros((HIDDEN, NLP), jnp.float32).at[:, :N_LABEL].set(wout)
    bout_pad = jnp.zeros((1, NLP), jnp.float32).at[:, :N_LABEL].set(bout)
    return {
        "Wx": jnp.concatenate(wx_l, axis=1),    # (IN_DIM, 4H) = (32, 128)
        "bx": jnp.concatenate(bx_l, axis=1),    # (1, 128)
        "Wh": jnp.concatenate(wh_l, axis=1),    # (HIDDEN, 4H) = (32, 128)
        "bh": jnp.concatenate(bh_l, axis=1),    # (1, 128)
        "Wout": wout_pad,                       # (32, 128)  lanes >= N_LABEL zero-padded
        "bout": bout_pad,                       # (1, 128)
    }


# ----------------------------------------------------------------------------
# Host-side tree handling: build a topological (post-order) node schedule
# ----------------------------------------------------------------------------
class Node:
    def __init__(self, value, label, children=()):
        self.value = value          # 1-based word index
        self.label = label
        self.children = list(children)
        self.state = None


def build_schedule(tree):
    flat = []

    def rec(node):
        child_slots = [rec(ch) for ch in node.children]
        assert len(child_slots) <= MAX_CHILDREN, "node has more than MAX_CHILDREN children"
        slot = len(flat)
        flat.append((node, child_slots))
        return slot

    rec(tree)
    num_nodes = len(flat)
    zero_slot = _nodes_pad(num_nodes) - 1          # reserved all-zero state slot
    widx = jnp.array([node.value - 1 for node, _ in flat], jnp.int32)
    # flattened (num_nodes * MAX_CHILDREN,) child table -> compact 1D SMEM
    cidx = jnp.array(
        [s for _, cs in flat for s in (cs + [zero_slot] * (MAX_CHILDREN - len(cs)))],
        jnp.int32)
    labels = jnp.array([(-1 if node.label is None else node.label) for node, _ in flat],
                       jnp.int32)
    return flat, widx, cidx, labels


# ----------------------------------------------------------------------------
# Pure-JAX mirror of the PyTorch module (correctness reference)
# ----------------------------------------------------------------------------
def ref_forward(tree, embeds, p):
    H = HIDDEN
    hp = jax.lax.Precision.HIGHEST

    def gate(v, W, b, g):
        return jnp.dot(v, W[:, g * H:(g + 1) * H], precision=hp) + b[:, g * H:(g + 1) * H]

    def rec(node):
        loss = jnp.zeros((), jnp.float32)
        cc, ch = [], []
        for child in node.children:
            (ck, hk), _, child_loss = rec(child)
            cc.append(ck); ch.append(hk)
            loss = loss + child_loss
        if not cc:
            cc = [jnp.zeros((1, H), jnp.float32)]
            ch = [jnp.zeros((1, H), jnp.float32)]
        child_c = jnp.concatenate(cc, axis=0)
        child_h = jnp.concatenate(ch, axis=0)
        x = embeds[node.value - 1][None, :]
        h_sum = jnp.sum(child_h, axis=0, keepdims=True)
        i = jax.nn.sigmoid(gate(x, p["Wx"], p["bx"], 0) + gate(h_sum, p["Wh"], p["bh"], 0))
        o = jax.nn.sigmoid(gate(x, p["Wx"], p["bx"], 1) + gate(h_sum, p["Wh"], p["bh"], 1))
        u = jnp.tanh(gate(x, p["Wx"], p["bx"], 2) + gate(h_sum, p["Wh"], p["bh"], 2))
        f = jax.nn.sigmoid(gate(child_h, p["Wh"], p["bh"], 3) + gate(x, p["Wx"], p["bx"], 3))
        c = i * u + jnp.sum(f * child_c, axis=0, keepdims=True)
        h = o * jnp.tanh(c)
        logits = jnp.dot(h, p["Wout"][:, :N_LABEL], precision=hp) + p["bout"][:, :N_LABEL]
        logp = jax.nn.log_softmax(logits, axis=1)
        if node.label is not None:
            loss = loss - logp[0, node.label]
        return (c, h), logp, loss

    return rec(tree)


# ----------------------------------------------------------------------------
if __name__ == "__main__":
    key = jax.random.PRNGKey(0)
    k_params, k_embed = jax.random.split(key)
    params = init_params(k_params)

    # embeds: (num_words, embed_dim); row (value - 1) is the node's input embedding
    embeds = jax.random.normal(k_embed, (NUM_WORDS, IN_DIM), jnp.float32)

    # small synthetic dependency tree
    tree = Node(1, 2, children=[
        Node(2, 1, children=[Node(3, 0), Node(5, 4)]),
        Node(4, 3),
    ])

    flat, widx, cidx, labels = build_schedule(tree)
    num_nodes = len(flat)

    fwd = jax.jit(tree_lstm_forward)
    logp_all, loss, state = fwd(widx, cidx, labels, embeds, params)
    jax.block_until_ready(logp_all)
    jax.block_until_ready(loss)
    jax.block_until_ready(state)

    # populate tree.state like the reference module does (packed [c | h] rows)
    c_state = state[:, :HIDDEN]
    h_state = state[:, HIDDEN:]
    for slot, (node, _) in enumerate(flat):
        node.state = (c_state[slot:slot + 1], h_state[slot:slot + 1])

    root_logp = logp_all[num_nodes - 1:num_nodes, :N_LABEL]   # root is last in post-order
    loss_val = loss[0, 0]

    # correctness check against the pure-JAX mirror of the PyTorch module
    _, ref_logp, ref_loss = ref_forward(tree, embeds, params)
    assert root_logp.shape == (1, N_LABEL)
    assert bool(jnp.isfinite(loss_val))
    assert bool(jnp.allclose(root_logp, ref_logp, atol=1e-3, rtol=1e-3))
    assert bool(jnp.allclose(loss_val, ref_loss, atol=1e-3, rtol=1e-3))
    print("KERNEL_OK")
</pallas_src>

<mosaic_0001>
module attributes {stable_mosaic.version = 11 : i64} {
  func.func @tree_lstm_kernel(%arg0: i32, %arg1: memref<5xi32, #tpu.memory_space<smem>>, %arg2: memref<20xi32, #tpu.memory_space<smem>>, %arg3: memref<8x32xf32, #tpu.memory_space<vmem>>, %arg4: memref<32x128xf32, #tpu.memory_space<vmem>>, %arg5: memref<32x128xf32, #tpu.memory_space<vmem>>, %arg6: memref<1x128xf32, #tpu.memory_space<vmem>>, %arg7: memref<32x128xf32, #tpu.memory_space<vmem>>, %arg8: memref<1x128xf32, #tpu.memory_space<vmem>>, %arg9: memref<8x1xi32, #tpu.memory_space<vmem>>, %arg10: memref<8x128xf32, #tpu.memory_space<vmem>>, %arg11: memref<1x1xf32, #tpu.memory_space<vmem>>, %arg12: memref<8x64xf32, #tpu.memory_space<vmem>>) attributes {dimension_semantics = [#tpu.dimension_semantics<arbitrary>], iteration_bounds = array<i64: 1>, scalar_prefetch = 2 : i64, scratch_operands = 0 : i64, tpu.core_type = #tpu.core_type<tc>, window_params = [{pipeline_mode = #tpu.pipeline_mode<synchronous>, transform_indices = @transform_0, window_bounds = array<i64: 8, 32>}, {pipeline_mode = #tpu.pipeline_mode<synchronous>, transform_indices = @transform_1, window_bounds = array<i64: 32, 128>}, {pipeline_mode = #tpu.pipeline_mode<synchronous>, transform_indices = @transform_2, window_bounds = array<i64: 32, 128>}, {pipeline_mode = #tpu.pipeline_mode<synchronous>, transform_indices = @transform_3, window_bounds = array<i64: 1, 128>}, {pipeline_mode = #tpu.pipeline_mode<synchronous>, transform_indices = @transform_4, window_bounds = array<i64: 32, 128>}, {pipeline_mode = #tpu.pipeline_mode<synchronous>, transform_indices = @transform_5, window_bounds = array<i64: 1, 128>}, {pipeline_mode = #tpu.pipeline_mode<synchronous>, transform_indices = @transform_6, window_bounds = array<i64: 8, 1>}, {pipeline_mode = #tpu.pipeline_mode<synchronous>, transform_indices = @transform_7, window_bounds = array<i64: 8, 128>}, {pipeline_mode = #tpu.pipeline_mode<synchronous>, transform_indices = @transform_8, window_bounds = array<i64: 1, 1>}, {pipeline_mode = #tpu.pipeline_mode<synchronous>, transform_indices = @transform_9, window_bounds = array<i64: 8, 64>}]} {
    %cst = arith.constant 0.000000e+00 : f32
    %0 = vector.broadcast %cst : f32 to vector<8x64xf32>
    %c0 = arith.constant 0 : index
    %c0_0 = arith.constant 0 : index
    %1 = vector.load %arg12[%c0, %c0_0] : memref<8x64xf32, #tpu.memory_space<vmem>>, vector<8x64xf32>
    tpu.vector_store %arg12[%c0, %c0_0], %0 {strides = array<i32>} : memref<8x64xf32, #tpu.memory_space<vmem>>, vector<8x64xf32>,
    %c0_1 = arith.constant 0 : index
    %c0_2 = arith.constant 0 : index
    %2 = vector.load %arg4[%c0_1, %c0_2] : memref<32x128xf32, #tpu.memory_space<vmem>>, vector<32x128xf32>
    %c0_3 = arith.constant 0 : index
    %c0_4 = arith.constant 0 : index
    %3 = vector.load %arg5[%c0_3, %c0_4] : memref<32x128xf32, #tpu.memory_space<vmem>>, vector<32x128xf32>
    %c0_5 = arith.constant 0 : index
    %c0_6 = arith.constant 0 : index
    %4 = vector.load %arg6[%c0_5, %c0_6] : memref<1x128xf32, #tpu.memory_space<vmem>>, vector<1x128xf32>
    %c0_i32 = arith.constant 0 : i32
    %c5_i32 = arith.constant 5 : i32
    %5 = arith.addi %c0_i32, %c5_i32 : i32
    %c1_i32 = arith.constant 1 : i32
    scf.for %arg13 = %c0_i32 to %5 step %c1_i32  : i32 {
      %c4_i32 = arith.constant 4 : i32
      %43 = arith.muli %arg13, %c4_i32 : i32
      %c0_i32_29 = arith.constant 0 : i32
      %44 = arith.addi %43, %c0_i32_29 : i32
      %45 = arith.index_cast %44 : i32 to index
      %46 = memref.load %arg2[%45] : memref<20xi32, #tpu.memory_space<smem>>
      %47 = arith.index_cast %46 : i32 to index
      %c0_30 = arith.constant 0 : index
      %48 = vector.load %arg12[%47, %c0_30] : memref<8x64xf32, #tpu.memory_space<vmem>>, vector<1x64xf32>
      %c1_i32_31 = arith.constant 1 : i32
      %49 = arith.addi %43, %c1_i32_31 : i32
      %50 = arith.index_cast %49 : i32 to index
      %51 = memref.load %arg2[%50] : memref<20xi32, #tpu.memory_space<smem>>
      %52 = arith.index_cast %51 : i32 to index
      %c0_32 = arith.constant 0 : index
      %53 = vector.load %arg12[%52, %c0_32] : memref<8x64xf32, #tpu.memory_space<vmem>>, vector<1x64xf32>
      %c2_i32 = arith.constant 2 : i32
      %54 = arith.addi %43, %c2_i32 : i32
      %55 = arith.index_cast %54 : i32 to index
      %56 = memref.load %arg2[%55] : memref<20xi32, #tpu.memory_space<smem>>
      %57 = arith.index_cast %56 : i32 to index
      %c0_33 = arith.constant 0 : index
      %58 = vector.load %arg12[%57, %c0_33] : memref<8x64xf32, #tpu.memory_space<vmem>>, vector<1x64xf32>
      %c3_i32 = arith.constant 3 : i32
      %59 = arith.addi %43, %c3_i32 : i32
      %60 = arith.index_cast %59 : i32 to index
      %61 = memref.load %arg2[%60] : memref<20xi32, #tpu.memory_space<smem>>
      %62 = arith.index_cast %61 : i32 to index
      %c0_34 = arith.constant 0 : index
      %63 = vector.load %arg12[%62, %c0_34] : memref<8x64xf32, #tpu.memory_space<vmem>>, vector<1x64xf32>
      %64 = tpu.concatenate %48, %53, %58, %63 in 0 : vector<1x64xf32>, vector<1x64xf32>, vector<1x64xf32>, vector<1x64xf32> -> vector<4x64xf32>
      %65 = vector.extract_strided_slice %64 {offsets = [0, 0], sizes = [4, 32], strides = [1, 1]} : vector<4x64xf32> to vector<4x32xf32>
      %66 = vector.extract_strided_slice %64 {offsets = [0, 32], sizes = [4, 32], strides = [1, 1]} : vector<4x64xf32> to vector<4x32xf32>
      %67 = arith.index_cast %arg13 : i32 to index
      %68 = memref.load %arg1[%67] : memref<5xi32, #tpu.memory_space<smem>>
      %69 = arith.index_cast %68 : i32 to index
      %c0_35 = arith.constant 0 : index
      %70 = vector.load %arg3[%69, %c0_35] : memref<8x32xf32, #tpu.memory_space<vmem>>, vector<1x32xf32>
      %cst_36 = arith.constant dense<0.000000e+00> : vector<1x128xf32>
      %71 = tpu.matmul %70, %2, %cst_36 {dimension_numbers = #tpu.dot_dimension_numbers<[1], [0], [0], [1], [0, 0, 1, 1], [], []>} : vector<1x32xf32>, vector<32x128xf32>, vector<1x128xf32> -> vector<1x128xf32>
      %72 = arith.addf %71, %4 : vector<1x128xf32>
      %cst_37 = arith.constant dense<0.000000e+00> : vector<4x128xf32>
      %73 = tpu.matmul %66, %3, %cst_37 {dimension_numbers = #tpu.dot_dimension_numbers<[1], [0], [0], [1], [0, 0, 1, 1], [], []>} : vector<4x32xf32>, vector<32x128xf32>, vector<4x128xf32> -> vector<4x128xf32>
      %cst_38 = arith.constant dense<0.000000e+00> : vector<128xf32>
      %74 = vector.multi_reduction <add>, %73, %cst_38 [0] : vector<4x128xf32> to vector<128xf32>
      %75 = vector.shape_cast %74 : vector<128xf32> to vector<1x128xf32>
      %76 = arith.addf %72, %75 : vector<1x128xf32>
      %77 = vector.extract_strided_slice %76 {offsets = [0, 0], sizes = [1, 32], strides = [1, 1]} : vector<1x128xf32> to vector<1x32xf32>
      %78 = arith.negf %77 : vector<1x32xf32>
      %79 = math.exp %78 : vector<1x32xf32>
      %cst_39 = arith.constant 1.000000e+00 : f32
      %80 = vector.broadcast %cst_39 : f32 to vector<1x32xf32>
      %81 = arith.addf %80, %79 : vector<1x32xf32>
      %82 = arith.divf %80, %81 : vector<1x32xf32>
      %83 = vector.extract_strided_slice %76 {offsets = [0, 32], sizes = [1, 32], strides = [1, 1]} : vector<1x128xf32> to vector<1x32xf32>
      %84 = arith.negf %83 : vector<1x32xf32>
      %85 = math.exp %84 : vector<1x32xf32>
      %cst_40 = arith.constant 1.000000e+00 : f32
      %86 = vector.broadcast %cst_40 : f32 to vector<1x32xf32>
      %87 = arith.addf %86, %85 : vector<1x32xf32>
      %88 = arith.divf %86, %87 : vector<1x32xf32>
      %89 = vector.extract_strided_slice %76 {offsets = [0, 64], sizes = [1, 32], strides = [1, 1]} : vector<1x128xf32> to vector<1x32xf32>
      %90 = math.tanh %89 : vector<1x32xf32>
      %91 = vector.extract_strided_slice %73 {offsets = [0, 96], sizes = [4, 32], strides = [1, 1]} : vector<4x128xf32> to vector<4x32xf32>
      %92 = vector.extract_strided_slice %72 {offsets = [0, 96], sizes = [1, 32], strides = [1, 1]} : vector<1x128xf32> to vector<1x32xf32>
      %93 = vector.broadcast %92 : vector<1x32xf32> to vector<4x32xf32>
      %94 = arith.addf %91, %93 : vector<4x32xf32>
      %95 = arith.negf %94 : vector<4x32xf32>
      %96 = math.exp %95 : vector<4x32xf32>
      %cst_41 = arith.constant 1.000000e+00 : f32
      %97 = vector.broadcast %cst_41 : f32 to vector<4x32xf32>
      %98 = arith.addf %97, %96 : vector<4x32xf32>
      %99 = arith.divf %97, %98 : vector<4x32xf32>
      %100 = arith.mulf %82, %90 : vector<1x32xf32>
      %101 = arith.mulf %99, %65 : vector<4x32xf32>
      %cst_42 = arith.constant dense<0.000000e+00> : vector<32xf32>
      %102 = vector.multi_reduction <add>, %101, %cst_42 [0] : vector<4x32xf32> to vector<32xf32>
      %103 = vector.shape_cast %102 : vector<32xf32> to vector<1x32xf32>
      %104 = arith.addf %100, %103 : vector<1x32xf32>
      %105 = math.tanh %104 : vector<1x32xf32>
      %106 = arith.mulf %88, %105 : vector<1x32xf32>
      %107 = arith.index_cast %arg13 : i32 to index
      %c0_43 = arith.constant 0 : index
      %108 = vector.load %arg12[%107, %c0_43] : memref<8x64xf32, #tpu.memory_space<vmem>>, vector<1x32xf32>
      tpu.vector_store %arg12[%107, %c0_43], %104 {strides = array<i32>} : memref<8x64xf32, #tpu.memory_space<vmem>>, vector<1x32xf32>,
      %109 = arith.index_cast %arg13 : i32 to index
      %c32_44 = arith.constant 32 : index
      %110 = vector.load %arg12[%109, %c32_44] : memref<8x64xf32, #tpu.memory_space<vmem>>, vector<1x32xf32>
      tpu.vector_store %arg12[%109, %c32_44], %106 {strides = array<i32>} : memref<8x64xf32, #tpu.memory_space<vmem>>, vector<1x32xf32>,
    }
    %c5_i32_7 = arith.constant 5 : i32
    %c0_8 = arith.constant 0 : index
    %c32 = arith.constant 32 : index
    %6 = vector.load %arg12[%c0_8, %c32] : memref<8x64xf32, #tpu.memory_space<vmem>>, vector<8x32xf32>
    %c0_9 = arith.constant 0 : index
    %c0_10 = arith.constant 0 : index
    %7 = vector.load %arg7[%c0_9, %c0_10] : memref<32x128xf32, #tpu.memory_space<vmem>>, vector<32x128xf32>
    %cst_11 = arith.constant dense<0.000000e+00> : vector<8x128xf32>
    %8 = tpu.matmul %6, %7, %cst_11 {dimension_numbers = #tpu.dot_dimension_numbers<[1], [0], [0], [1], [0, 0, 1, 1], [], []>} : vector<8x32xf32>, vector<32x128xf32>, vector<8x128xf32> -> vector<8x128xf32>
    %c0_12 = arith.constant 0 : index
    %c0_13 = arith.constant 0 : index
    %9 = vector.load %arg8[%c0_12, %c0_13] : memref<1x128xf32, #tpu.memory_space<vmem>>, vector<1x128xf32>
    %10 = vector.broadcast %9 : vector<1x128xf32> to vector<8x128xf32>
    %11 = arith.addf %8, %10 : vector<8x128xf32>
    %12 = tpu.iota {dimensions = array<i32: 1>} : vector<8x128xi32>
    %c5_i32_14 = arith.constant 5 : i32
    %13 = vector.broadcast %c5_i32_14 : i32 to vector<8x128xi32>
    %14 = arith.cmpi slt, %12, %13 : vector<8x128xi32>
    %cst_15 = arith.constant -1.000000e+30 : f32
    %15 = vector.broadcast %cst_15 : f32 to vector<8x128xf32>
    %16 = arith.select %14, %11, %15 : vector<8x128xi1>, vector<8x128xf32>
    %cst_16 = arith.constant dense<0xFF800000> : vector<8xf32>
    %17 = vector.multi_reduction <maximumf>, %16, %cst_16 [1] : vector<8x128xf32> to vector<8xf32>
    %18 = vector.shape_cast %17 : vector<8xf32> to vector<8x1xf32>
    %19 = vector.broadcast %18 : vector<8x1xf32> to vector<8x128xf32>
    %20 = arith.subf %16, %19 : vector<8x128xf32>
    %21 = math.exp %20 : vector<8x128xf32>
    %cst_17 = arith.constant 0.000000e+00 : f32
    %22 = vector.broadcast %cst_17 : f32 to vector<8x128xf32>
    %23 = arith.select %14, %21, %22 : vector<8x128xi1>, vector<8x128xf32>
    %cst_18 = arith.constant dense<0.000000e+00> : vector<8xf32>
    %24 = vector.multi_reduction <add>, %23, %cst_18 [1] : vector<8x128xf32> to vector<8xf32>
    %25 = vector.shape_cast %24 : vector<8xf32> to vector<8x1xf32>
    %26 = math.log %25 : vector<8x1xf32>
    %27 = arith.addf %26, %18 : vector<8x1xf32>
    %28 = vector.broadcast %27 : vector<8x1xf32> to vector<8x128xf32>
    %29 = arith.subf %16, %28 : vector<8x128xf32>
    %c0_19 = arith.constant 0 : index
    %c0_20 = arith.constant 0 : index
    %30 = vector.load %arg10[%c0_19, %c0_20] : memref<8x128xf32, #tpu.memory_space<vmem>>, vector<8x128xf32>
    tpu.vector_store %arg10[%c0_19, %c0_20], %29 {strides = array<i32>} : memref<8x128xf32, #tpu.memory_space<vmem>>, vector<8x128xf32>,
    %c0_21 = arith.constant 0 : index
    %c0_22 = arith.constant 0 : index
    %31 = vector.load %arg9[%c0_21, %c0_22] : memref<8x1xi32, #tpu.memory_space<vmem>>, vector<8x1xi32>
    %32 = vector.broadcast %31 : vector<8x1xi32> to vector<8x128xi32>
    %33 = arith.cmpi eq, %12, %32 : vector<8x128xi32>
    %cst_23 = arith.constant 0.000000e+00 : f32
    %34 = vector.broadcast %cst_23 : f32 to vector<8x128xf32>
    %35 = arith.select %33, %29, %34 : vector<8x128xi1>, vector<8x128xf32>
    %cst_24 = arith.constant dense<0.000000e+00> : vector<8xf32>
    %36 = vector.multi_reduction <add>, %35, %cst_24 [1] : vector<8x128xf32> to vector<8xf32>
    %37 = vector.shape_cast %36 : vector<8xf32> to vector<8x1xf32>
    %cst_25 = arith.constant dense<0.000000e+00> : vector<1xf32>
    %38 = vector.multi_reduction <add>, %37, %cst_25 [0] : vector<8x1xf32> to vector<1xf32>
    %39 = vector.shape_cast %38 : vector<1xf32> to vector<1x1xf32>
    %cst_26 = arith.constant 0.000000e+00 : f32
    %40 = vector.broadcast %cst_26 : f32 to vector<1x1xf32>
    %41 = arith.subf %40, %39 : vector<1x1xf32>
    %c0_27 = arith.constant 0 : index
    %c0_28 = arith.constant 0 : index
    %42 = vector.load %arg11[%c0_27, %c0_28] : memref<1x1xf32, #tpu.memory_space<vmem>>, vector<1x1xf32>
    tpu.vector_store %arg11[%c0_27, %c0_28], %41 {strides = array<i32>} : memref<1x1xf32, #tpu.memory_space<vmem>>, vector<1x1xf32>,
    return
  }
  func.func @transform_0(%arg0: i32, %arg1: memref<5xi32, #tpu.memory_space<smem>>, %arg2: memref<20xi32, #tpu.memory_space<smem>>) -> (i32, i32) {
    %c0_i32 = arith.constant 0 : i32
    %c0_i32_0 = arith.constant 0 : i32
    %c0_i32_1 = arith.constant 0 : i32
    return %c0_i32, %c0_i32_0 : i32, i32
  }
  func.func @transform_1(%arg0: i32, %arg1: memref<5xi32, #tpu.memory_space<smem>>, %arg2: memref<20xi32, #tpu.memory_space<smem>>) -> (i32, i32) {
    %c0_i32 = arith.constant 0 : i32
    %c0_i32_0 = arith.constant 0 : i32
    %c0_i32_1 = arith.constant 0 : i32
    return %c0_i32, %c0_i32_0 : i32, i32
  }
  func.func @transform_2(%arg0: i32, %arg1: memref<5xi32, #tpu.memory_space<smem>>, %arg2: memref<20xi32, #tpu.memory_space<smem>>) -> (i32, i32) {
    %c0_i32 = arith.constant 0 : i32
    %c0_i32_0 = arith.constant 0 : i32
    %c0_i32_1 = arith.constant 0 : i32
    return %c0_i32, %c0_i32_0 : i32, i32
  }
  func.func @transform_3(%arg0: i32, %arg1: memref<5xi32, #tpu.memory_space<smem>>, %arg2: memref<20xi32, #tpu.memory_space<smem>>) -> (i32, i32) {
    %c0_i32 = arith.constant 0 : i32
    %c0_i32_0 = arith.constant 0 : i32
    %c0_i32_1 = arith.constant 0 : i32
    return %c0_i32, %c0_i32_0 : i32, i32
  }
  func.func @transform_4(%arg0: i32, %arg1: memref<5xi32, #tpu.memory_space<smem>>, %arg2: memref<20xi32, #tpu.memory_space<smem>>) -> (i32, i32) {
    %c0_i32 = arith.constant 0 : i32
    %c0_i32_0 = arith.constant 0 : i32
    %c0_i32_1 = arith.constant 0 : i32
    return %c0_i32, %c0_i32_0 : i32, i32
  }
  func.func @transform_5(%arg0: i32, %arg1: memref<5xi32, #tpu.memory_space<smem>>, %arg2: memref<20xi32, #tpu.memory_space<smem>>) -> (i32, i32) {
    %c0_i32 = arith.constant 0 : i32
    %c0_i32_0 = arith.constant 0 : i32
    %c0_i32_1 = arith.constant 0 : i32
    return %c0_i32, %c0_i32_0 : i32, i32
  }
  func.func @transform_6(%arg0: i32, %arg1: memref<5xi32, #tpu.memory_space<smem>>, %arg2: memref<20xi32, #tpu.memory_space<smem>>) -> (i32, i32) {
    %c0_i32 = arith.constant 0 : i32
    %c0_i32_0 = arith.constant 0 : i32
    %c0_i32_1 = arith.constant 0 : i32
    return %c0_i32, %c0_i32_0 : i32, i32
  }
  func.func @transform_7(%arg0: i32, %arg1: memref<5xi32, #tpu.memory_space<smem>>, %arg2: memref<20xi32, #tpu.memory_space<smem>>) -> (i32, i32) {
    %c0_i32 = arith.constant 0 : i32
    %c0_i32_0 = arith.constant 0 : i32
    %c0_i32_1 = arith.constant 0 : i32
    return %c0_i32, %c0_i32_0 : i32, i32
  }
  func.func @transform_8(%arg0: i32, %arg1: memref<5xi32, #tpu.memory_space<smem>>, %arg2: memref<20xi32, #tpu.memory_space<smem>>) -> (i32, i32) {
    %c0_i32 = arith.constant 0 : i32
    %c0_i32_0 = arith.constant 0 : i32
    %c0_i32_1 = arith.constant 0 : i32
    return %c0_i32, %c0_i32_0 : i32, i32
  }
  func.func @transform_9(%arg0: i32, %arg1: memref<5xi32, #tpu.memory_space<smem>>, %arg2: memref<20xi32, #tpu.memory_space<smem>>) -> (i32, i32) {
    %c0_i32 = arith.constant 0 : i32
    %c0_i32_0 = arith.constant 0 : i32
    %c0_i32_1 = arith.constant 0 : i32
    return %c0_i32, %c0_i32_0 : i32, i32
  }
}

</mosaic_0001>

<llo_original>
// kernel: tree_lstm_forward.1
$region0: #{tree_lstm_forward.1}
  #allocation0 [shape = 'u32[]', space=smem, size = 0x4, offset = 0x4, fixed_abs, tag = 'smem constant byte address 0x4 - core index']
  #allocation1 [shape = 'u32[144,128]{1,0:T(1,128)}', space=vmem, size = 0x12000, scoped, tag = 'internal scratch']
  #allocation2 [shape = 's32[1]{0}', space=sflag, size = 0x4, scoped, tag = 'scoped memory for tree_lstm_forward.1']
  #allocation3 [shape = 'u8[512]{0}', space=smem, size = 0x200, scoped, tag = 'prefetched SMEM operand 0']
  #allocation4 [shape = 'u8[512]{0}', space=smem, size = 0x200, scoped, tag = 'prefetched SMEM operand 1']
  %s0 = inlined_call_operand.vmem [shape: s32[5], index: 0, kind: input, shape index: {}]
  %s1 = inlined_call_operand.vmem [shape: s32[20], index: 1, kind: input, shape index: {}]
  %s2 = inlined_call_operand.vmem [shape: f32[8,32], index: 2, kind: input, shape index: {}]
  %s3 = inlined_call_operand.vmem [shape: f32[32,128], index: 3, kind: input, shape index: {}]
  %s4 = inlined_call_operand.hbm [shape: f32[32,128], index: 4, kind: input, shape index: {}]
  %s5 = inlined_call_operand.vmem [shape: f32[1,128], index: 5, kind: input, shape index: {}]
  %s6 = inlined_call_operand.hbm [shape: f32[32,128], index: 6, kind: input, shape index: {}]
  %s7 = inlined_call_operand.vmem [shape: f32[1,128], index: 7, kind: input, shape index: {}]
  %s8 = inlined_call_operand.vmem [shape: s32[8,1], index: 8, kind: input, shape index: {}]
  %s9 = inlined_call_operand.hbm [shape: f32[8,128], index: 9, kind: output, shape index: {0}]
  %s10 = inlined_call_operand.hbm [shape: f32[1,1], index: 10, kind: output, shape index: {1}]
  %s11 = inlined_call_operand.hbm [shape: f32[8,64], index: 11, kind: output, shape index: {2}]
  %12 = xla_tuple %s9, %s10, %s11
  %s13 = sld [smem:[#allocation0]]
  $region69: #{tree_lstm_forward.1} parent=0
    _
  %s15 = ssub.s32 1, %s13
  %s16 = scalar_select 0, %s15, %s13
  %s17 = sshll.u32 %s0, 4
  %s18 = int_to_ptr.vmem [resolvable:$true] %s17
  %20 = dma.vmem_to_smem %s18, 16, [#allocation3], [#allocation2]
  %s21 = sshll.u32 %s1, 4
  %s22 = int_to_ptr.vmem [resolvable:$true] %s21
  %24 = dma.vmem_to_smem %s22, 16, [#allocation4], [#allocation2]
  %25 = dma.done [#allocation2], 32
  %26 = sfence
  $region1: #{tree_lstm_forward.1} parent=0
    #allocation5 [shape = 'u8[16384]{0}', space=vmem, size = 0x4000, scoped, tag = 'input window, operand 4, single buffered']
    #allocation6 [shape = 's32[1]{0}', space=sflag, size = 0x4, scoped, tag = 'scoped memory for tree_lstm_forward.1']
    #allocation7 [shape = 's32[1]{0}', space=sflag, size = 0x4, scoped, tag = 'scoped memory for tree_lstm_forward.1']
    #allocation8 [shape = 'u8[16384]{0}', space=vmem, size = 0x4000, scoped, tag = 'input window, operand 6, single buffered']
    #allocation9 [shape = 's32[1]{0}', space=sflag, size = 0x4, scoped, tag = 'scoped memory for tree_lstm_forward.1']
    #allocation10 [shape = 'u8[4096]{0}', space=vmem, size = 0x1000, scoped, tag = 'output window, operand 0, single buffered']
    #allocation11 [shape = 'u8[512]{0}', space=vmem, size = 0x400, scoped, tag = 'output window, operand 1, single buffered']
    #allocation12 [shape = 's32[1]{0}', space=sflag, size = 0x4, scoped, tag = 'scoped memory for tree_lstm_forward.1']
    #allocation13 [shape = 'u8[4096]{0}', space=vmem, size = 0x1000, scoped, tag = 'output window, operand 2, single buffered']
    %27 = vsyncpa [#allocation6], 0
    %28 = vsyncpa [#allocation9], 0
    %29 = vsyncpa [#allocation7], 0
    %30 = vsyncpa [#allocation12], 0
    // Predicated region
    $region2: #{tree_lstm_forward.1} parent=1 // pred_check
      _
    $region3: #{tree_lstm_forward.1} parent=1 // pred_check_branch
      %32 = sbr.rel (0) target = $region5
    $region4: #{tree_lstm_forward.1} parent=1 // pred_region
      _
    $region5: #{tree_lstm_forward.1} parent=1 // pred_fallthru
      _
    // Predicated region
    $region6: #{tree_lstm_forward.1} parent=1 // pred_check
      _
    $region7: #{tree_lstm_forward.1} parent=1 // pred_check_branch
      %34 = sbr.rel (0) target = $region9
    $region8: #{tree_lstm_forward.1} parent=1 // pred_region
      _
    $region9: #{tree_lstm_forward.1} parent=1 // pred_fallthru
      _
    // Predicated region
    $region10: #{tree_lstm_forward.1} parent=1 // pred_check
      _
    $region11: #{tree_lstm_forward.1} parent=1 // pred_check_branch
      %36 = sbr.rel (0) target = $region13
    $region12: #{tree_lstm_forward.1} parent=1 // pred_region
      %s38 = ssub.s32 512, 512
      %39 = vsyncadd [#allocation6], %s38
      %s40 = sshll.u32 [#allocation5], 4
      %s41 = int_to_ptr.vmem [resolvable:$true] %s40
      %46 = dma.hbm_to_vmem [thread:$0]  %s4, 512, %s41, [#allocation6], 128, 128, 8
    $region13: #{tree_lstm_forward.1} parent=1 // pred_fallthru
      _
    // Predicated region
    $region14: #{tree_lstm_forward.1} parent=1 // pred_check
      _
    $region15: #{tree_lstm_forward.1} parent=1 // pred_check_branch
      %48 = sbr.rel (0) target = $region17
    $region16: #{tree_lstm_forward.1} parent=1 // pred_region
      _
    $region17: #{tree_lstm_forward.1} parent=1 // pred_fallthru
      _
    // Predicated region
    $region18: #{tree_lstm_forward.1} parent=1 // pred_check
      _
    $region19: #{tree_lstm_forward.1} parent=1 // pred_check_branch
      %50 = sbr.rel (0) target = $region21
    $region20: #{tree_lstm_forward.1} parent=1 // pred_region
      %s52 = ssub.s32 512, 512
      %53 = vsyncadd [#allocation9], %s52
      %s54 = sshll.u32 [#allocation8], 4
      %s55 = int_to_ptr.vmem [resolvable:$true] %s54
      %60 = dma.hbm_to_vmem [thread:$0]  %s6, 512, %s55, [#allocation9], 128, 128, 8
    $region21: #{tree_lstm_forward.1} parent=1 // pred_fallthru
      _
    // Predicated region
    $region22: #{tree_lstm_forward.1} parent=1 // pred_check
      _
    $region23: #{tree_lstm_forward.1} parent=1 // pred_check_branch
      %62 = sbr.rel (0) target = $region25
    $region24: #{tree_lstm_forward.1} parent=1 // pred_region
      _
    $region25: #{tree_lstm_forward.1} parent=1 // pred_fallthru
      _
    // Predicated region
    $region26: #{tree_lstm_forward.1} parent=1 // pred_check
      _
    $region27: #{tree_lstm_forward.1} parent=1 // pred_check_branch
      %64 = sbr.rel (0) target = $region29
    $region28: #{tree_lstm_forward.1} parent=1 // pred_region
      _
    $region29: #{tree_lstm_forward.1} parent=1 // pred_fallthru
      _
    // Predicated region
    $region30: #{tree_lstm_forward.1} parent=1 // pred_check
      _
    $region31: #{tree_lstm_forward.1} parent=1 // pred_check_branch
      %66 = sbr.rel (0) target = $region33
    $region32: #{tree_lstm_forward.1} parent=1 // pred_region
      %67 = dma.done [#allocation6], 512
    $region33: #{tree_lstm_forward.1} parent=1 // pred_fallthru
      _
    // Predicated region
    $region34: #{tree_lstm_forward.1} parent=1 // pred_check
      _
    $region35: #{tree_lstm_forward.1} parent=1 // pred_check_branch
      %69 = sbr.rel (0) target = $region37
    $region36: #{tree_lstm_forward.1} parent=1 // pred_region
      %70 = dma.done [#allocation9], 512
    $region37: #{tree_lstm_forward.1} parent=1 // pred_fallthru
      _
    %vm71 = vcmask 523264
    %72 = vst.msk [vmem:[#allocation13] sm:$0xff] %vm71, 0.0
    %v73 = vld [vmem:[%s3] sm:$0xff]
    %v74 = vld [vmem:[%s3 + $0x8] sm:$0xff]
    %v75 = vld [vmem:[%s3 + $0x10] sm:$0xff]
    %v76 = vld [vmem:[%s3 + $0x18] sm:$0xff]
    %v77 = vld [vmem:[#allocation5] sm:$0xff]
    %v78 = vld [vmem:[#allocation5 + $0x8] sm:$0xff]
    %v79 = vld [vmem:[#allocation5 + $0x10] sm:$0xff]
    %v80 = vld [vmem:[#allocation5 + $0x18] sm:$0xff]
    %v81 = vld [vmem:[%s5] sm:$0x1]
    loop: start=0, step=1, limit=5
    $region38: #{tree_lstm_forward.1} parent=1 // loop_pre_header
      _
    $region39: #{tree_lstm_forward.1} parent=1 // loop_header
      %s83 = sphi 0, %s87
      %p84 = scmp.ge.s32.totalorder %s83, 5
    $region40: #{tree_lstm_forward.1} parent=1 // loop_header_branch
      %86 = sbr.rel (%p84) target = $region44
    $region41: #{tree_lstm_forward.1} parent=1 // loop_body
      %s88 = smul.u32 %s83, 4
      %s89 = sld [smem:[#allocation4 + %s88]]
      %s90 = scalar_lea.vmem [#allocation13], %s89
      %v91 = vld [vmem:[%s90] sm:$0x1]
      %s92 = sadd.s32 %s88, 1
      %s93 = sld [smem:[#allocation4 + %s92]]
      %s94 = scalar_lea.vmem [#allocation13], %s93
      %v95 = vld [vmem:[%s94] sm:$0x1]
      %s96 = sadd.s32 %s88, 2
      %s97 = sld [smem:[#allocation4 + %s96]]
      %s98 = scalar_lea.vmem [#allocation13], %s97
      %v99 = vld [vmem:[%s98] sm:$0x1]
      %s100 = sadd.s32 %s88, 3
      %s101 = sld [smem:[#allocation4 + %s100]]
      %s102 = scalar_lea.vmem [#allocation13], %s101
      %v103 = vld [vmem:[%s102] sm:$0x1]
      %v105 = vrot.slane %v95, 7
      %v108 = vrot.slane %v99, 6
      %v111 = vrot.slane %v103, 5
      %vm113 = vcmask 1040384
      %v114 = vsel %vm113, %v91, %v105
      %vm115 = vcmask 1041408
      %v116 = vsel %vm115, %v114, %v108
      %vm117 = vcmask 1042432
      %v118 = vsel %vm117, %v116, %v111
      %s119 = sld [smem:[#allocation3 + %s83]]
      %s120 = scalar_lea.vmem %s2, %s119
      %v121 = vld [vmem:[%s120] sm:$0x1]
      %vm122 = vcmask 261120
      %v124 = vsel %vm122, %v121, 0
      %126 = vmatprep.subr.mxu0 0.0
      %127 = vmatpush1.msra.mxu0 %v73
      %128 = vmatprep.subr.mxu0 0.0
      %129 = vmatpush1.msra.mxu0 %v74
      %130 = vmatprep.subr.mxu0 0.0
      %131 = vmatpush1.msra.mxu0 %v75
      %132 = vmatprep.subr.mxu0 0.0
      %133 = vmatpush1.msra.mxu0 %v76
      %134 = vmatprep.subr.mxu0 0.0
      %135 = vmatpush1.msra.mxu0 0.0
      %136 = vmatprep.subr.mxu0 0.0
      %137 = vmatpush1.msra.mxu0 0.0
      %138 = vmatprep.subr.mxu0 0.0
      %139 = vmatpush1.msra.mxu0 0.0
      %140 = vmatprep.subr.mxu0 0.0
      %141 = vmatpush1.msra.mxu0 0.0
      %142 = vmatprep.subr.mxu0 0.0
      %143 = vmatpush1.msra.mxu0 0.0
      %144 = vmatprep.subr.mxu0 0.0
      %145 = vmatpush1.msra.mxu0 0.0
      %146 = vmatprep.subr.mxu0 0.0
      %147 = vmatpush1.msra.mxu0 0.0
      %148 = vmatprep.subr.mxu0 0.0
      %149 = vmatpush1.msra.mxu0 0.0
      %150 = vmatprep.subr.mxu0 0.0
      %151 = vmatpush1.msra.mxu0 0.0
      %152 = vmatprep.subr.mxu0 0.0
      %153 = vmatpush1.msra.mxu0 0.0
      %154 = vmatprep.subr.mxu0 0.0
      %155 = vmatpush1.msra.mxu0 0.0
      %156 = vmatprep.subr.mxu0 0.0
      %157 = vmatpush1.msra.mxu0 0.0
      %158 = vmatprep.subr.mxu0 0.0
      %159 = vmatpush1.msra.mxu0 0.0
      %160 = vmatprep.subr.mxu0 0.0
      %161 = vmatpush1.msra.mxu0 0.0
      %162 = vmatprep.subr.mxu0 0.0
      %163 = vmatpush1.msra.mxu0 0.0
      %164 = vmatprep.subr.mxu0 0.0
      %165 = vmatpush1.msra.mxu0 0.0
      %166 = vmatprep.subr.mxu0 0.0
      %167 = vmatpush1.msra.mxu0 0.0
      %168 = vmatprep.subr.mxu0 0.0
      %169 = vmatpush1.msra.mxu0 0.0
      %170 = vmatprep.subr.mxu0 0.0
      %171 = vmatpush1.msra.mxu0 0.0
      %172 = vmatprep.subr.mxu0 0.0
      %173 = vmatpush1.msra.mxu0 0.0
      %174 = vmatprep.subr.mxu0 0.0
      %175 = vmatpush1.msra.mxu0 0.0
      %176 = vmatprep.subr.mxu0 0.0
      %177 = vmatpush1.msra.mxu0 0.0
      %178 = vmatprep.subr.mxu0 0.0
      %179 = vmatpush1.msra.mxu0 0.0
      %180 = vmatprep.subr.mxu0 0.0
      %181 = vmatpush1.msra.mxu0 0.0
      %182 = vmatprep.subr.mxu0 0.0
      %183 = vmatpush1.msra.mxu0 0.0
      %184 = vmatprep.subr.mxu0 0.0
      %185 = vmatpush1.msra.mxu0 0.0
      %186 = vmatprep.subr.mxu0 0.0
      %187 = vmatpush1.msra.mxu0 0.0
      %188 = vmatprep.subr.mxu0 0.0
      %189 = vmatpush1.msra.mxu0 0.0
      %190 = vmatprep.mubr.f32.mxu0 0.0
      %191 = vmatmul.mubr.f32.gmra.mrb[0].mxu0 %v124
      %v192 = vpop.f32.mrb[0].mxu0
      %v193 = vadd.f32 %v81, %v192
      %v194 = vpop.f32.mrb[0].mxu0
      %195 = vdwg.mxu0
      %197 = vrot.lane.b32.xlu0 %v118, 96
      %v198 = vpop.permute.xlu0 %197
      %v199 = vsel %vm122, %v198, 0
      %201 = vmatprep.subr.mxu0 0.0
      %202 = vmatpush1.msra.mxu0 %v77
      %203 = vmatprep.subr.mxu0 0.0
      %204 = vmatpush1.msra.mxu0 %v78
      %205 = vmatprep.subr.mxu0 0.0
      %206 = vmatpush1.msra.mxu0 %v79
      %207 = vmatprep.subr.mxu0 0.0
      %208 = vmatpush1.msra.mxu0 %v80
      %209 = vmatprep.subr.mxu0 0.0
      %210 = vmatpush1.msra.mxu0 0.0
      %211 = vmatprep.subr.mxu0 0.0
      %212 = vmatpush1.msra.mxu0 0.0
      %213 = vmatprep.subr.mxu0 0.0
      %214 = vmatpush1.msra.mxu0 0.0
      %215 = vmatprep.subr.mxu0 0.0
      %216 = vmatpush1.msra.mxu0 0.0
      %217 = vmatprep.subr.mxu0 0.0
      %218 = vmatpush1.msra.mxu0 0.0
      %219 = vmatprep.subr.mxu0 0.0
      %220 = vmatpush1.msra.mxu0 0.0
      %221 = vmatprep.subr.mxu0 0.0
      %222 = vmatpush1.msra.mxu0 0.0
      %223 = vmatprep.subr.mxu0 0.0
      %224 = vmatpush1.msra.mxu0 0.0
      %225 = vmatprep.subr.mxu0 0.0
      %226 = vmatpush1.msra.mxu0 0.0
      %227 = vmatprep.subr.mxu0 0.0
      %228 = vmatpush1.msra.mxu0 0.0
      %229 = vmatprep.subr.mxu0 0.0
      %230 = vmatpush1.msra.mxu0 0.0
      %231 = vmatprep.subr.mxu0 0.0
      %232 = vmatpush1.msra.mxu0 0.0
      %233 = vmatprep.subr.mxu0 0.0
      %234 = vmatpush1.msra.mxu0 0.0
      %235 = vmatprep.subr.mxu0 0.0
      %236 = vmatpush1.msra.mxu0 0.0
      %237 = vmatprep.subr.mxu0 0.0
      %238 = vmatpush1.msra.mxu0 0.0
      %239 = vmatprep.subr.mxu0 0.0
      %240 = vmatpush1.msra.mxu0 0.0
      %241 = vmatprep.subr.mxu0 0.0
      %242 = vmatpush1.msra.mxu0 0.0
      %243 = vmatprep.subr.mxu0 0.0
      %244 = vmatpush1.msra.mxu0 0.0
      %245 = vmatprep.subr.mxu0 0.0
      %246 = vmatpush1.msra.mxu0 0.0
      %247 = vmatprep.subr.mxu0 0.0
      %248 = vmatpush1.msra.mxu0 0.0
      %249 = vmatprep.subr.mxu0 0.0
      %250 = vmatpush1.msra.mxu0 0.0
      %251 = vmatprep.subr.mxu0 0.0
      %252 = vmatpush1.msra.mxu0 0.0
      %253 = vmatprep.subr.mxu0 0.0
      %254 = vmatpush1.msra.mxu0 0.0
      %255 = vmatprep.subr.mxu0 0.0
      %256 = vmatpush1.msra.mxu0 0.0
      %257 = vmatprep.subr.mxu0 0.0
      %258 = vmatpush1.msra.mxu0 0.0
      %259 = vmatprep.subr.mxu0 0.0
      %260 = vmatpush1.msra.mxu0 0.0
      %261 = vmatprep.subr.mxu0 0.0
      %262 = vmatpush1.msra.mxu0 0.0
      %263 = vmatprep.subr.mxu0 0.0
      %264 = vmatpush1.msra.mxu0 0.0
      %265 = vmatprep.mubr.f32.mxu0 0.0
      %266 = vmatmul.mubr.f32.gmra.mrb[0].mxu0 %v199
      %v267 = vpop.f32.mrb[0].mxu0
      %v268 = vadd.f32 0.0, %v267
      %v269 = vpop.f32.mrb[0].mxu0
      %270 = vdwg.mxu0
      %vm271 = vcmask 1043456
      %v272 = vsel %vm271, %v268, 0.0
      %v273 = vrot.slane %v272, 4
      %v274 = vadd.f32 %v272, %v273
      %v275 = vrot.slane %v274, 2
      %v276 = vadd.f32 %v274, %v275
      %v277 = vrot.slane %v276, 1
      %v278 = vadd.f32 %v276, %v277
      %v279 = vadd.f32 %v193, %v278
      %v280 = vxor.u32 %v279, 2147483648
      %v281 = vmul.f32 %v280, 1.442695
      %v282 = vpow.pop %v281
      %v283 = vadd.f32 %v282, 1.0
      %v284 = vrcp.pop %v283
      %v285 = vmul.f32 1.0, %v284
      %v286 = vtanh.pop %v279
      %v287 = vlaneseq
      %v288 = vshrl.u32 %v287, 7
      %v289 = vsub.s32 0, %v288
      %v290 = vrot.slane %v193, %v289
      %v291 = vadd.f32 %v268, %v290
      %v292 = vxor.u32 %v291, 2147483648
      %v293 = vmul.f32 %v292, 1.442695
      %v294 = vpow.pop %v293
      %v295 = vadd.f32 %v294, 1.0
      %v296 = vrcp.pop %v295
      %v297 = vmul.f32 1.0, %v296
      %299 = vrot.lane.b32.xlu0 %v286, 64
      %v300 = vpop.permute.xlu0 %299
      %v302 = vmul.f32 %v285, %v300
      %v304 = vmul.f32 %v297, %v198
      %vm305 = vcmask 1044224
      %v306 = vsel %vm305, %v304, 0.0
      %v307 = vrot.slane %v306, 4
      %v308 = vadd.f32 %v306, %v307
      %v309 = vrot.slane %v308, 2
      %v310 = vadd.f32 %v308, %v309
      %v311 = vrot.slane %v310, 1
      %v312 = vadd.f32 %v310, %v311
      %314 = vrot.lane.b32.xlu0 %v312, 32
      %v315 = vpop.permute.xlu0 %314
      %v317 = vadd.f32 %v302, %v315
      %v318 = vtanh.pop %v317
      %320 = vrot.lane.b32.xlu0 %v318, 32
      %v321 = vpop.permute.xlu0 %320
      %v323 = vmul.f32 %v285, %v321
      %s324 = scalar_lea.vmem [#allocation13], %s83
      %vm325 = vcmask 253952
      %326 = vst.msk [vmem:[%s324] sm:$0x1] %vm325, %v317
      %vm327 = vcmask 516352
      %328 = vst.msk [vmem:[%s324] sm:$0x1] %vm327, %v323
    $region42: #{tree_lstm_forward.1} parent=1 // loop_footer
      %s87 = sadd.s32 1, %s83
    $region43: #{tree_lstm_forward.1} parent=1 // loop_footer_branch
      %82 = sbr.rel target = $region39
    $region44: #{tree_lstm_forward.1} parent=1 // loop_exit
      _
    %v329 = vld [vmem:[#allocation13] sm:$0xff]
    %v330 = vld [vmem:[#allocation8] sm:$0xff]
    %v331 = vld [vmem:[#allocation8 + $0x8] sm:$0xff]
    %v332 = vld [vmem:[#allocation8 + $0x10] sm:$0xff]
    %v333 = vld [vmem:[#allocation8 + $0x18] sm:$0xff]
    %v334 = vld [vmem:[%s7] sm:$0x1]
    %v336 = vlaneseq
    %v337 = vshrl.u32 %v336, 7
    %v338 = vsub.s32 0, %v337
    %v339 = vrot.slane %v334, %v338
    %342 = vrot.lane.b32.xlu0 %v329, 96
    %v343 = vpop.permute.xlu0 %342
    %vm344 = vcmask 261120
    %v345 = vsel %vm344, %v343, 0
    %347 = vmatprep.subr.mxu0 0.0
    %348 = vmatpush1.msra.mxu0 %v330
    %349 = vmatprep.subr.mxu0 0.0
    %350 = vmatpush1.msra.mxu0 %v331
    %351 = vmatprep.subr.mxu0 0.0
    %352 = vmatpush1.msra.mxu0 %v332
    %353 = vmatprep.subr.mxu0 0.0
    %354 = vmatpush1.msra.mxu0 %v333
    %355 = vmatprep.subr.mxu0 0.0
    %356 = vmatpush1.msra.mxu0 0.0
    %357 = vmatprep.subr.mxu0 0.0
    %358 = vmatpush1.msra.mxu0 0.0
    %359 = vmatprep.subr.mxu0 0.0
    %360 = vmatpush1.msra.mxu0 0.0
    %361 = vmatprep.subr.mxu0 0.0
    %362 = vmatpush1.msra.mxu0 0.0
    %363 = vmatprep.subr.mxu0 0.0
    %364 = vmatpush1.msra.mxu0 0.0
    %365 = vmatprep.subr.mxu0 0.0
    %366 = vmatpush1.msra.mxu0 0.0
    %367 = vmatprep.subr.mxu0 0.0
    %368 = vmatpush1.msra.mxu0 0.0
    %369 = vmatprep.subr.mxu0 0.0
    %370 = vmatpush1.msra.mxu0 0.0
    %371 = vmatprep.subr.mxu0 0.0
    %372 = vmatpush1.msra.mxu0 0.0
    %373 = vmatprep.subr.mxu0 0.0
    %374 = vmatpush1.msra.mxu0 0.0
    %375 = vmatprep.subr.mxu0 0.0
    %376 = vmatpush1.msra.mxu0 0.0
    %377 = vmatprep.subr.mxu0 0.0
    %378 = vmatpush1.msra.mxu0 0.0
    %379 = vmatprep.subr.mxu0 0.0
    %380 = vmatpush1.msra.mxu0 0.0
    %381 = vmatprep.subr.mxu0 0.0
    %382 = vmatpush1.msra.mxu0 0.0
    %383 = vmatprep.subr.mxu0 0.0
    %384 = vmatpush1.msra.mxu0 0.0
    %385 = vmatprep.subr.mxu0 0.0
    %386 = vmatpush1.msra.mxu0 0.0
    %387 = vmatprep.subr.mxu0 0.0
    %388 = vmatpush1.msra.mxu0 0.0
    %389 = vmatprep.subr.mxu0 0.0
    %390 = vmatpush1.msra.mxu0 0.0
    %391 = vmatprep.subr.mxu0 0.0
    %392 = vmatpush1.msra.mxu0 0.0
    %393 = vmatprep.subr.mxu0 0.0
    %394 = vmatpush1.msra.mxu0 0.0
    %395 = vmatprep.subr.mxu0 0.0
    %396 = vmatpush1.msra.mxu0 0.0
    %397 = vmatprep.subr.mxu0 0.0
    %398 = vmatpush1.msra.mxu0 0.0
    %399 = vmatprep.subr.mxu0 0.0
    %400 = vmatpush1.msra.mxu0 0.0
    %401 = vmatprep.subr.mxu0 0.0
    %402 = vmatpush1.msra.mxu0 0.0
    %403 = vmatprep.subr.mxu0 0.0
    %404 = vmatpush1.msra.mxu0 0.0
    %405 = vmatprep.subr.mxu0 0.0
    %406 = vmatpush1.msra.mxu0 0.0
    %407 = vmatprep.subr.mxu0 0.0
    %408 = vmatpush1.msra.mxu0 0.0
    %409 = vmatprep.subr.mxu0 0.0
    %410 = vmatpush1.msra.mxu0 0.0
    %411 = vmatprep.mubr.f32.mxu0 0.0
    %412 = vmatmul.mubr.f32.gmra.mrb[0].mxu0 %v345
    %v413 = vpop.f32.mrb[0].mxu0
    %v414 = vadd.f32 %v339, %v413
    %v415 = vpop.f32.mrb[0].mxu0
    %416 = vdwg.mxu0
    %v417 = vlaneseq
    %v418 = vand.u32 %v417, 127
    %vm419 = vcmp.lt.s32.totalorder %v418, 5
    %v420 = vsel %vm419, %v414, -1e+30
    %421 = vmax.xlane.f32.xlu0 %v420
    %v422 = vpop.xlane.xlu0 %421
    %v423 = vsub.f32 %v420, %v422
    %v424 = vmul.f32 %v423, 1.442695
    %v425 = vpow.pop %v424
    %v426 = vsel %vm419, %v425, 0.0
    %427 = vadd.xlane.f32.xlu0 %v426
    %v428 = vpop.xlane.xlu0 %427
    %v429 = vlog2.pop %v428
    %v430 = vmul.f32 %v429, 0.6931472
    %v431 = vadd.f32 %v430, %v422
    %v432 = vsub.f32 %v420, %v431
    %433 = vst [vmem:[#allocation10] sm:$0xff] %v432
    %v434 = vld [vmem:[%s8] sm:$0xff]
    %435 = vset.pattern.permute.xlu0 0
    %436 = vperm.xlu0 %435, %v434
    %v437 = vpop.permute.xlu0 %436
    %vm438 = vcmp.eq.s32.totalorder %v418, %v437
    %v439 = vsel %vm438, %v432, 0.0
    %440 = vadd.xlane.f32.xlu0 %v439
    %v441 = vpop.xlane.xlu0 %440
    %v442 = vrot.slane %v441, 4
    %v443 = vadd.f32 %v441, %v442
    %v444 = vrot.slane %v443, 2
    %v445 = vadd.f32 %v443, %v444
    %v446 = vrot.slane %v445, 1
    %v447 = vadd.f32 %v445, %v446
    %v448 = vsub.f32 0.0, %v447
    %vm449 = vcmask 0
    %450 = vst.msk [vmem:[#allocation11] sm:$0x1] %vm449, %v448
    // Predicated region
    $region45: #{tree_lstm_forward.1} parent=1 // pred_check
      _
    $region46: #{tree_lstm_forward.1} parent=1 // pred_check_branch
      %452 = sbr.rel (0) target = $region48
    $region47: #{tree_lstm_forward.1} parent=1 // pred_region
      %s454 = ssub.s32 128, 128
      %455 = vsyncadd [#allocation7], %s454
      %s457 = sshll.u32 [#allocation10], 4
      %s458 = int_to_ptr.vmem [resolvable:$true] %s457
      %460 = dma.vmem_to_hbm [thread:$0]  %s458, 128, %s9, [#allocation7]
    $region48: #{tree_lstm_forward.1} parent=1 // pred_fallthru
      _
    // Predicated region
    $region49: #{tree_lstm_forward.1} parent=1 // pred_check
      _
    $region50: #{tree_lstm_forward.1} parent=1 // pred_check_branch
      %462 = sbr.rel (0) target = $region52
    $region51: #{tree_lstm_forward.1} parent=1 // pred_region
      %s464 = ssub.s32 16, 16
      %465 = vsyncadd [#allocation12], %s464
      %s467 = sshll.u32 [#allocation11], 4
      %s468 = int_to_ptr.vmem [resolvable:$true] %s467
      %470 = dma.vmem_to_hbm [thread:$0]  %s468, 16, %s10, [#allocation12]
    $region52: #{tree_lstm_forward.1} parent=1 // pred_fallthru
      _
    // Predicated region
    $region53: #{tree_lstm_forward.1} parent=1 // pred_check
      _
    $region54: #{tree_lstm_forward.1} parent=1 // pred_check_branch
      %472 = sbr.rel (0) target = $region56
    $region55: #{tree_lstm_forward.1} parent=1 // pred_region
      %s474 = ssub.s32 128, 128
      %475 = vsyncadd [#allocation12], %s474
      %s477 = sshll.u32 [#allocation13], 4
      %s478 = int_to_ptr.vmem [resolvable:$true] %s477
      %480 = dma.vmem_to_hbm [thread:$0]  %s478, 128, %s11, [#allocation12]
    $region56: #{tree_lstm_forward.1} parent=1 // pred_fallthru
      _
    // Predicated region
    $region57: #{tree_lstm_forward.1} parent=1 // pred_check
      _
    $region58: #{tree_lstm_forward.1} parent=1 // pred_check_branch
      %482 = sbr.rel (0) target = $region60
    $region59: #{tree_lstm_forward.1} parent=1 // pred_region
      %483 = dma.done [#allocation7], 128
    $region60: #{tree_lstm_forward.1} parent=1 // pred_fallthru
      _
    // Predicated region
    $region61: #{tree_lstm_forward.1} parent=1 // pred_check
      _
    $region62: #{tree_lstm_forward.1} parent=1 // pred_check_branch
      %485 = sbr.rel (0) target = $region64
    $region63: #{tree_lstm_forward.1} parent=1 // pred_region
      %486 = dma.done [#allocation12], 16
    $region64: #{tree_lstm_forward.1} parent=1 // pred_fallthru
      _
    // Predicated region
    $region65: #{tree_lstm_forward.1} parent=1 // pred_check
      _
    $region66: #{tree_lstm_forward.1} parent=1 // pred_check_branch
      %488 = sbr.rel (0) target = $region68
    $region67: #{tree_lstm_forward.1} parent=1 // pred_region
      %489 = dma.done [#allocation12], 128
    $region68: #{tree_lstm_forward.1} parent=1 // pred_fallthru
      _
    %490 = vsyncpa [#allocation6], 1
    %491 = vsyncpa [#allocation9], 1
    %492 = vsyncpa [#allocation7], 1
    %493 = vsyncpa [#allocation12], 1

</llo_original>
